<compile_context>
chip_gen: v6e
topology: v6e:2x2x1
jax: 0.10.0
libtpu: 0.0.40
codegen_flags: <defaults>
</compile_context>

<pallas_src>
import math

import jax
import jax.numpy as jnp
from jax.experimental import pallas as pl
from jax.experimental.pallas import tpu as pltpu

_LANE = 128
_SUBLANE = 8


def _round_up(n, m):
    return ((n + m - 1) // m) * m


def _physical_vmem_bytes():
    try:
        return int(pltpu.get_tpu_info().vmem_capacity_bytes)
    except Exception:
        return 64 << 20  # conservative default (v7x per-TensorCore VMEM)


def _resident_spec(shape):
    """BlockSpec for an array whose block index never changes (weights/biases).

    Single-buffered: the block is DMA'd once and stays resident, halving its
    VMEM footprint versus the default double-buffering.
    """
    if hasattr(pl, "Buffered"):
        return pl.BlockSpec(shape, lambda i: (0, 0), pipeline_mode=pl.Buffered(1))
    return pl.BlockSpec(shape, lambda i: (0, 0))


def mlp_kernel(x_ref, w1_ref, b1_ref, w2_ref, b2_ref, w3_ref, b3_ref, o_ref):
    # fc1 + ReLU (MXU matmul, f32 accumulation; bias/ReLU on the VPU in f32).
    # x is cast per-tile inside the kernel (free on the VPU; avoids an extra
    # HBM read+write pass a wrapper-side cast would cost in the bf16 path).
    x = x_ref[...].astype(w1_ref.dtype)
    h1 = jnp.dot(x, w1_ref[...], preferred_element_type=jnp.float32)
    h1 = jnp.maximum(h1 + b1_ref[...], 0.0)
    # fc2 + ReLU (H2 is lane-padded with zero weight columns -> padded h2
    # columns are exactly 0 and contribute nothing to fc3).
    h2 = jnp.dot(h1.astype(w2_ref.dtype), w2_ref[...],
                 preferred_element_type=jnp.float32)
    h2 = jnp.maximum(h2 + b2_ref[...], 0.0)
    # fc3: weight columns are lane-padded so the MXU runs full columns, but
    # only the real D_out columns are stored to the (narrow) HBM output.
    out = jnp.dot(h2.astype(w3_ref.dtype), w3_ref[...],
                  preferred_element_type=jnp.float32) + b3_ref[...]
    d_out = o_ref.shape[-1]
    o_ref[...] = out[:, :d_out].astype(o_ref.dtype)


def mlp_forward(x, w1, b1, w2, b2, w3, b3, *, tile_b=512, compute_dtype=None):
    """x: (B, D_in); w*: (in, out); b*: (1, out). Returns (B, D_out).

    compute_dtype: e.g. jnp.bfloat16 (valid on v5e/v6e/v7x — all have a
    bf16-native MXU) to halve weight DMA bytes; the x tile is cast inside the
    kernel and accumulation / bias / ReLU stay f32.  For weights reused across
    many calls, pre-cast them once outside the jitted region instead.
    """
    out_dtype = x.dtype
    B, D_in = x.shape
    H1 = w1.shape[1]
    H2 = w2.shape[1]
    D_out = w3.shape[1]

    # Optional low-precision matmul path; x is NOT cast here (in-kernel cast).
    if compute_dtype is not None:
        w1 = w1.astype(compute_dtype)
        w2 = w2.astype(compute_dtype)
        w3 = w3.astype(compute_dtype)
    b1 = b1.astype(jnp.float32)
    b2 = b2.astype(jnp.float32)
    b3 = b3.astype(jnp.float32)

    # Lane-dense H2: pad hidden//2 up to a 128 multiple with zero w2 columns /
    # zero b2 entries / zero w3 rows (padded h2 columns are exactly 0).
    H2_p = _round_up(H2, _LANE)
    if H2_p != H2:
        w2 = jnp.pad(w2, ((0, 0), (0, H2_p - H2)))
        b2 = jnp.pad(b2, ((0, 0), (0, H2_p - H2)))
        w3 = jnp.pad(w3, ((0, H2_p - H2), (0, 0)))

    # fc3 weights/bias lane-padded so the last matmul uses full MXU columns;
    # the HBM output itself stays at the true D_out width (kernel slices).
    D_out_p = _round_up(max(D_out, _LANE), _LANE)
    if D_out_p != D_out:
        w3 = jnp.pad(w3, ((0, 0), (0, D_out_p - D_out)))
        b3 = jnp.pad(b3, ((0, 0), (0, D_out_p - D_out)))

    # Batch tiling: no wrapper-side padding of x — ragged batches are handled
    # by a cdiv grid with masked partial-block writeback.  Keep the grid at
    # >= 2 steps when the batch allows so both v7x TensorCores get work.
    tile_b = max(_SUBLANE, (tile_b // _SUBLANE) * _SUBLANE)
    B_sub = _round_up(B, _SUBLANE)
    if B_sub >= 2 * _SUBLANE:
        tile_b = min(tile_b, max(_SUBLANE, ((B_sub // 2) // _SUBLANE) * _SUBLANE))
    tile_b = max(_SUBLANE, min(tile_b, B_sub))

    # VMEM budget: weights/biases resident once (Buffered(1)), x/out tiles
    # double-buffered, plus f32 activation temporaries and a margin.  Cap with
    # generation-aware headroom (~80% of physical VMEM).
    w_itemsize = jnp.dtype(w1.dtype).itemsize
    x_itemsize = jnp.dtype(x.dtype).itemsize
    o_itemsize = jnp.dtype(out_dtype).itemsize
    weight_bytes = (D_in * H1 + H1 * H2_p + H2_p * D_out_p) * w_itemsize \
        + (H1 + H2_p + D_out_p) * 4

    def _budget(tb):
        io_tile = tb * (D_in * x_itemsize + D_out * o_itemsize)
        act = tb * (H1 + H2_p + D_out_p) * 4
        return weight_bytes + 2 * io_tile + act + (4 << 20)

    vmem_cap = int(_physical_vmem_bytes() * 0.8)
    while _budget(tile_b) > vmem_cap and tile_b > _SUBLANE:
        tile_b = max(_SUBLANE, ((tile_b // 2) // _SUBLANE) * _SUBLANE)
    vmem_bytes = int(min(max(_budget(tile_b), 16 << 20), vmem_cap))
    # TODO(synk): if hidden_size grows so resident weights exceed the cap,
    # K-tile w1 with an "arbitrary" reduction grid axis + f32 acc scratch.

    grid = (pl.cdiv(B, tile_b),)

    cost = pl.CostEstimate(
        flops=2 * B * (D_in * H1 + H1 * H2_p + H2_p * D_out_p),
        transcendentals=0,
        bytes_accessed=int(B * D_in * x_itemsize + weight_bytes
                           + B * D_out * o_itemsize),
    )

    out = pl.pallas_call(
        mlp_kernel,
        out_shape=jax.ShapeDtypeStruct((B, D_out), out_dtype),
        grid_spec=pltpu.PrefetchScalarGridSpec(
            num_scalar_prefetch=0,
            grid=grid,
            in_specs=[
                pl.BlockSpec((tile_b, D_in), lambda i: (i, 0)),  # x tile
                _resident_spec((D_in, H1)),       # w1 (resident, single-buffered)
                _resident_spec((1, H1)),          # b1
                _resident_spec((H1, H2_p)),       # w2 (lane-padded cols)
                _resident_spec((1, H2_p)),        # b2
                _resident_spec((H2_p, D_out_p)),  # w3 (lane-padded rows+cols)
                _resident_spec((1, D_out_p)),     # b3 (lane-padded)
            ],
            out_specs=pl.BlockSpec((tile_b, D_out), lambda i: (i, 0)),
        ),
        compiler_params=pltpu.CompilerParams(
            dimension_semantics=("parallel",),
            vmem_limit_bytes=vmem_bytes,
        ),
        cost_estimate=cost,
    )(x, w1, b1, w2, b2, w3, b3)
    return out


def init_params(key, input_size, hidden_size, output_size, dtype=jnp.float32):
    """Deterministic synthetic params (PyTorch Linear-style uniform init)."""
    def linear_init(k, fan_in, fan_out):
        k_w, k_b = jax.random.split(k)
        bound = 1.0 / math.sqrt(float(fan_in))
        # Stored as (in, out) == W.T relative to PyTorch's (out, in).
        w = jax.random.uniform(k_w, (fan_in, fan_out), dtype, -bound, bound)
        b = jax.random.uniform(k_b, (1, fan_out), dtype, -bound, bound)
        return w, b

    k1, k2, k3 = jax.random.split(key, 3)
    w1, b1 = linear_init(k1, input_size, hidden_size)
    w2, b2 = linear_init(k2, hidden_size, hidden_size // 2)
    w3, b3 = linear_init(k3, hidden_size // 2, output_size)
    return w1, b1, w2, b2, w3, b3


def _ref_mlp(x, w1, b1, w2, b2, w3, b3):
    h = jnp.maximum(x @ w1 + b1, 0.0)
    h = jnp.maximum(h @ w2 + b2, 0.0)
    return h @ w3 + b3


if __name__ == "__main__":
    key = jax.random.PRNGKey(0)
    k_x, k_p, k_x2, k_p2 = jax.random.split(key, 4)

    # --- Main check: small shapes consistent with the module; grid length 2. ---
    B, input_size, hidden_size, output_size = 256, 256, 128, 2
    x = jax.random.normal(k_x, (B, input_size), jnp.float32)
    params = init_params(k_p, input_size, hidden_size, output_size)

    out = jax.block_until_ready(mlp_forward(x, *params))
    ref = _ref_mlp(x, *params)
    assert out.shape == (B, output_size)
    assert jnp.allclose(out, ref, atol=1e-4, rtol=1e-4)

    # --- Ragged-batch check (B not a multiple of the tile; no wrapper pad). ---
    B2, in2, hid2 = 20, 64, 32
    x2 = jax.random.normal(k_x2, (B2, in2), jnp.float32)
    params2 = init_params(k_p2, in2, hid2, output_size)
    out2 = jax.block_until_ready(mlp_forward(x2, *params2))
    ref2 = _ref_mlp(x2, *params2)
    assert out2.shape == (B2, output_size)
    assert jnp.allclose(out2, ref2, atol=1e-4, rtol=1e-4)

    # --- bf16 compute path (weights cast once; x cast in-kernel; f32 acc). ---
    out_bf16 = jax.block_until_ready(
        mlp_forward(x, *params, compute_dtype=jnp.bfloat16))
    assert out_bf16.shape == (B, output_size)
    assert bool(jnp.all(jnp.isfinite(out_bf16)))
    assert jnp.allclose(out_bf16, ref, atol=1e-1, rtol=1e-1)

    print("KERNEL_OK")
</pallas_src>

<mosaic_0001>
module attributes {stable_mosaic.version = 11 : i64} {
  func.func @mlp_kernel(%arg0: i32, %arg1: memref<128x256xf32, #tpu.memory_space<vmem>>, %arg2: memref<256x128xf32, #tpu.memory_space<vmem>>, %arg3: memref<1x128xf32, #tpu.memory_space<vmem>>, %arg4: memref<128x128xf32, #tpu.memory_space<vmem>>, %arg5: memref<1x128xf32, #tpu.memory_space<vmem>>, %arg6: memref<128x128xf32, #tpu.memory_space<vmem>>, %arg7: memref<1x128xf32, #tpu.memory_space<vmem>>, %arg8: memref<128x2xf32, #tpu.memory_space<vmem>>) attributes {dimension_semantics = [#tpu.dimension_semantics<parallel>], iteration_bounds = array<i64: 2>, scalar_prefetch = 0 : i64, scratch_operands = 0 : i64, tpu.core_type = #tpu.core_type<tc>, window_params = [{transform_indices = @transform_0, window_bounds = array<i64: 128, 256>}, {pipeline_mode = #tpu.pipeline_mode<synchronous>, transform_indices = @transform_1, window_bounds = array<i64: 256, 128>}, {pipeline_mode = #tpu.pipeline_mode<synchronous>, transform_indices = @transform_2, window_bounds = array<i64: 1, 128>}, {pipeline_mode = #tpu.pipeline_mode<synchronous>, transform_indices = @transform_3, window_bounds = array<i64: 128, 128>}, {pipeline_mode = #tpu.pipeline_mode<synchronous>, transform_indices = @transform_4, window_bounds = array<i64: 1, 128>}, {pipeline_mode = #tpu.pipeline_mode<synchronous>, transform_indices = @transform_5, window_bounds = array<i64: 128, 128>}, {pipeline_mode = #tpu.pipeline_mode<synchronous>, transform_indices = @transform_6, window_bounds = array<i64: 1, 128>}, {transform_indices = @transform_7, window_bounds = array<i64: 128, 2>}]} {
    %c0 = arith.constant 0 : index
    %c0_0 = arith.constant 0 : index
    %0 = vector.load %arg1[%c0, %c0_0] : memref<128x256xf32, #tpu.memory_space<vmem>>, vector<128x256xf32>
    %c0_1 = arith.constant 0 : index
    %c0_2 = arith.constant 0 : index
    %1 = vector.load %arg2[%c0_1, %c0_2] : memref<256x128xf32, #tpu.memory_space<vmem>>, vector<256x128xf32>
    %cst = arith.constant dense<0.000000e+00> : vector<128x128xf32>
    %2 = tpu.matmul %0, %1, %cst {dimension_numbers = #tpu.dot_dimension_numbers<[1], [0], [0], [1], [0, 0, 1, 1], [], []>} : vector<128x256xf32>, vector<256x128xf32>, vector<128x128xf32> -> vector<128x128xf32>
    %c0_3 = arith.constant 0 : index
    %c0_4 = arith.constant 0 : index
    %3 = vector.load %arg3[%c0_3, %c0_4] : memref<1x128xf32, #tpu.memory_space<vmem>>, vector<1x128xf32>
    %4 = vector.broadcast %3 : vector<1x128xf32> to vector<128x128xf32>
    %5 = arith.addf %2, %4 : vector<128x128xf32>
    %cst_5 = arith.constant 0.000000e+00 : f32
    %6 = vector.broadcast %cst_5 : f32 to vector<128x128xf32>
    %7 = arith.maximumf %5, %6 : vector<128x128xf32>
    %c0_6 = arith.constant 0 : index
    %c0_7 = arith.constant 0 : index
    %8 = vector.load %arg4[%c0_6, %c0_7] : memref<128x128xf32, #tpu.memory_space<vmem>>, vector<128x128xf32>
    %cst_8 = arith.constant dense<0.000000e+00> : vector<128x128xf32>
    %9 = tpu.matmul %7, %8, %cst_8 {dimension_numbers = #tpu.dot_dimension_numbers<[1], [0], [0], [1], [0, 0, 1, 1], [], []>} : vector<128x128xf32>, vector<128x128xf32>, vector<128x128xf32> -> vector<128x128xf32>
    %c0_9 = arith.constant 0 : index
    %c0_10 = arith.constant 0 : index
    %10 = vector.load %arg5[%c0_9, %c0_10] : memref<1x128xf32, #tpu.memory_space<vmem>>, vector<1x128xf32>
    %11 = vector.broadcast %10 : vector<1x128xf32> to vector<128x128xf32>
    %12 = arith.addf %9, %11 : vector<128x128xf32>
    %cst_11 = arith.constant 0.000000e+00 : f32
    %13 = vector.broadcast %cst_11 : f32 to vector<128x128xf32>
    %14 = arith.maximumf %12, %13 : vector<128x128xf32>
    %c0_12 = arith.constant 0 : index
    %c0_13 = arith.constant 0 : index
    %15 = vector.load %arg6[%c0_12, %c0_13] : memref<128x128xf32, #tpu.memory_space<vmem>>, vector<128x128xf32>
    %cst_14 = arith.constant dense<0.000000e+00> : vector<128x128xf32>
    %16 = tpu.matmul %14, %15, %cst_14 {dimension_numbers = #tpu.dot_dimension_numbers<[1], [0], [0], [1], [0, 0, 1, 1], [], []>} : vector<128x128xf32>, vector<128x128xf32>, vector<128x128xf32> -> vector<128x128xf32>
    %c0_15 = arith.constant 0 : index
    %c0_16 = arith.constant 0 : index
    %17 = vector.load %arg7[%c0_15, %c0_16] : memref<1x128xf32, #tpu.memory_space<vmem>>, vector<1x128xf32>
    %18 = vector.broadcast %17 : vector<1x128xf32> to vector<128x128xf32>
    %19 = arith.addf %16, %18 : vector<128x128xf32>
    %20 = vector.extract_strided_slice %19 {offsets = [0, 0], sizes = [128, 2], strides = [1, 1]} : vector<128x128xf32> to vector<128x2xf32>
    %c0_17 = arith.constant 0 : index
    %c0_18 = arith.constant 0 : index
    %21 = vector.load %arg8[%c0_17, %c0_18] : memref<128x2xf32, #tpu.memory_space<vmem>>, vector<128x2xf32>
    tpu.vector_store %arg8[%c0_17, %c0_18], %20 {strides = array<i32>} : memref<128x2xf32, #tpu.memory_space<vmem>>, vector<128x2xf32>,
    return
  }
  func.func @transform_0(%arg0: i32) -> (i32, i32) {
    %c0_i32 = arith.constant 0 : i32
    %c0_i32_0 = arith.constant 0 : i32
    return %arg0, %c0_i32 : i32, i32
  }
  func.func @transform_1(%arg0: i32) -> (i32, i32) {
    %c0_i32 = arith.constant 0 : i32
    %c0_i32_0 = arith.constant 0 : i32
    %c0_i32_1 = arith.constant 0 : i32
    return %c0_i32, %c0_i32_0 : i32, i32
  }
  func.func @transform_2(%arg0: i32) -> (i32, i32) {
    %c0_i32 = arith.constant 0 : i32
    %c0_i32_0 = arith.constant 0 : i32
    %c0_i32_1 = arith.constant 0 : i32
    return %c0_i32, %c0_i32_0 : i32, i32
  }
  func.func @transform_3(%arg0: i32) -> (i32, i32) {
    %c0_i32 = arith.constant 0 : i32
    %c0_i32_0 = arith.constant 0 : i32
    %c0_i32_1 = arith.constant 0 : i32
    return %c0_i32, %c0_i32_0 : i32, i32
  }
  func.func @transform_4(%arg0: i32) -> (i32, i32) {
    %c0_i32 = arith.constant 0 : i32
    %c0_i32_0 = arith.constant 0 : i32
    %c0_i32_1 = arith.constant 0 : i32
    return %c0_i32, %c0_i32_0 : i32, i32
  }
  func.func @transform_5(%arg0: i32) -> (i32, i32) {
    %c0_i32 = arith.constant 0 : i32
    %c0_i32_0 = arith.constant 0 : i32
    %c0_i32_1 = arith.constant 0 : i32
    return %c0_i32, %c0_i32_0 : i32, i32
  }
  func.func @transform_6(%arg0: i32) -> (i32, i32) {
    %c0_i32 = arith.constant 0 : i32
    %c0_i32_0 = arith.constant 0 : i32
    %c0_i32_1 = arith.constant 0 : i32
    return %c0_i32, %c0_i32_0 : i32, i32
  }
  func.func @transform_7(%arg0: i32) -> (i32, i32) {
    %c0_i32 = arith.constant 0 : i32
    %c0_i32_0 = arith.constant 0 : i32
    return %arg0, %c0_i32 : i32, i32
  }
}

</mosaic_0001>

<llo_original>
// kernel: tpu_custom_call.1
$region0: #{tpu_custom_call.1}
  #allocation0 [shape = 'u32[]', space=smem, size = 0x4, offset = 0x4, fixed_abs, tag = 'smem constant byte address 0x4 - core index']
  #allocation1 [shape = 'u32[144,128]{1,0:T(1,128)}', space=vmem, size = 0x12000, scoped, tag = 'internal scratch']
  %s0 = inlined_call_operand.hbm [shape: f32[256,256], index: 0, kind: input, shape index: {}]
  %s1 = inlined_call_operand.hbm [shape: f32[256,128], index: 1, kind: input, shape index: {}]
  %s2 = inlined_call_operand.vmem [shape: f32[1,128], index: 2, kind: input, shape index: {}]
  %s3 = inlined_call_operand.hbm [shape: f32[128,128], index: 3, kind: input, shape index: {}]
  %s4 = inlined_call_operand.vmem [shape: f32[1,128], index: 4, kind: input, shape index: {}]
  %s5 = inlined_call_operand.hbm [shape: f32[128,128], index: 5, kind: input, shape index: {}]
  %s6 = inlined_call_operand.vmem [shape: f32[1,128], index: 6, kind: input, shape index: {}]
  %s7 = inlined_call_operand.vmem [shape: f32[256,2], index: 7, kind: output, shape index: {}]
  %s8 = sld [smem:[#allocation0]]
  $region77: #{tpu_custom_call.1} parent=0
    _
  %s10 = ssub.s32 1, %s8
  %s11 = scalar_select 0, %s10, %s8
  $region1: #{tpu_custom_call.1} parent=0
    #allocation2 [shape = 'u8[262144]{0}', space=vmem, size = 0x40000, scoped, tag = 'input window, operand 0']
    #allocation3 [shape = 's32[2]{0}', space=sflag, size = 0x8, scoped, tag = 'scoped memory for tpu_custom_call.1']
    #allocation4 [shape = 'u8[131072]{0}', space=vmem, size = 0x20000, scoped, tag = 'input window, operand 1, single buffered']
    #allocation5 [shape = 's32[1]{0}', space=sflag, size = 0x4, scoped, tag = 'scoped memory for tpu_custom_call.1']
    #allocation6 [shape = 'u8[65536]{0}', space=vmem, size = 0x10000, scoped, tag = 'input window, operand 3, single buffered']
    #allocation7 [shape = 'u8[65536]{0}', space=vmem, size = 0x10000, scoped, tag = 'input window, operand 5, single buffered']
    #allocation8 [shape = 's32[1]{0}', space=sflag, size = 0x4, scoped, tag = 'scoped memory for tpu_custom_call.1']
    %12 = vsyncpa [#allocation3], 0
    %s13 = scalar_lea.sflag [#allocation3], 1
    %14 = vsyncpa %s13, 0
    %15 = vsyncpa [#allocation5], 0
    %16 = vsyncpa [#allocation8], 0
    loop: start=0, step=1, limit=4
    $region2: #{tpu_custom_call.1} parent=1 // loop_pre_header
      _
    $region3: #{tpu_custom_call.1} parent=1 // loop_header
      %s18 = sphi 0, %s22
      %p19 = scmp.ge.s32.totalorder %s18, 4
      %s28 = sphi 0, %s30
      %s31 = sphi 0, %s28
      %s32 = sphi 0, %s31
      %s48 = sphi 0, %s32
      %s52 = sphi 0, %s52
      %s54 = sphi 0, %s52
      %s55 = sphi 0, %s54
      %s69 = sphi 0, %s55
      %s73 = sphi 0, %s73
      %s75 = sphi 0, %s73
      %s76 = sphi 0, %s75
      %s90 = sphi 0, %s76
      %s94 = sphi 0, %s94
      %s96 = sphi 0, %s94
      %s97 = sphi 0, %s96
      %s111 = sphi 0, %s97
      %s115 = sphi 0, %s115
      %s117 = sphi 0, %s115
      %s118 = sphi 0, %s117
      %s132 = sphi 0, %s118
      %s136 = sphi 0, %s136
      %s138 = sphi 0, %s136
      %s139 = sphi 0, %s138
      %s153 = sphi 0, %s139
      %s157 = sphi 0, %s157
      %s159 = sphi 0, %s157
      %s160 = sphi 0, %s159
      %s174 = sphi 0, %s160
      %s180 = sphi 0, %s182
      %s183 = sphi 0, %s180
      %s184 = sphi 0, %s183
      %s200 = sphi 0, %s184
    $region4: #{tpu_custom_call.1} parent=1 // loop_header_branch
      %21 = sbr.rel (%p19) target = $region8
    $region5: #{tpu_custom_call.1} parent=1 // loop_body
      %s23 = ssub.s32 %s18, 1
      %s24 = ssub.s32 %s18, 2
      %s25 = sadd.s32 %s18, 1
      %s26 = ssub.s32 %s18, %s25
      %p27 = scmp.eq.s32.totalorder %s26, 0
      %s29 = sadd.s32 %s28, 1
      %s30 = scalar_select %p27, %s28, %s29
      %p33 = pneg %p27
      %p34 = scmp.eq.s32.totalorder %s18, 1
      %p35 = por %p33, %p34
      %p36 = scmp.ne.s32.totalorder %s28, %s31
      %p37 = scmp.eq.s32.totalorder %s18, 0
      %p38 = por %p36, %p37
      %p39 = scmp.ne.s32.totalorder %s28, %s31
      %p40 = scmp.eq.s32.totalorder %s23, 1
      %p41 = por %p39, %p40
      %p42 = scmp.ne.s32.totalorder %s31, %s32
      %p43 = scmp.eq.s32.totalorder %s23, 0
      %p44 = por %p42, %p43
      %p45 = scmp.ne.s32.totalorder %s31, %s32
      %p46 = scmp.eq.s32.totalorder %s24, 1
      %p47 = por %p45, %p46
      %p49 = scmp.ne.s32.totalorder %s32, %s48
      %p50 = scmp.eq.s32.totalorder %s24, 0
      %p51 = por %p49, %p50
      %s53 = sadd.s32 %s52, 1
      %p56 = scmp.eq.s32.totalorder %s18, 1
      %p57 = scmp.ne.s32.totalorder %s52, %s54
      %p58 = scmp.eq.s32.totalorder %s18, 0
      %p59 = por %p57, %p58
      %p60 = scmp.ne.s32.totalorder %s52, %s54
      %p61 = scmp.eq.s32.totalorder %s23, 1
      %p62 = por %p60, %p61
      %p63 = scmp.ne.s32.totalorder %s54, %s55
      %p64 = scmp.eq.s32.totalorder %s23, 0
      %p65 = por %p63, %p64
      %p66 = scmp.ne.s32.totalorder %s54, %s55
      %p67 = scmp.eq.s32.totalorder %s24, 1
      %p68 = por %p66, %p67
      %p70 = scmp.ne.s32.totalorder %s55, %s69
      %p71 = scmp.eq.s32.totalorder %s24, 0
      %p72 = por %p70, %p71
      %s74 = sadd.s32 %s73, 1
      %p77 = scmp.eq.s32.totalorder %s18, 1
      %p78 = scmp.ne.s32.totalorder %s73, %s75
      %p79 = scmp.eq.s32.totalorder %s18, 0
      %p80 = por %p78, %p79
      %p81 = scmp.ne.s32.totalorder %s73, %s75
      %p82 = scmp.eq.s32.totalorder %s23, 1
      %p83 = por %p81, %p82
      %p84 = scmp.ne.s32.totalorder %s75, %s76
      %p85 = scmp.eq.s32.totalorder %s23, 0
      %p86 = por %p84, %p85
      %p87 = scmp.ne.s32.totalorder %s75, %s76
      %p88 = scmp.eq.s32.totalorder %s24, 1
      %p89 = por %p87, %p88
      %p91 = scmp.ne.s32.totalorder %s76, %s90
      %p92 = scmp.eq.s32.totalorder %s24, 0
      %p93 = por %p91, %p92
      %s95 = sadd.s32 %s94, 1
      %p98 = scmp.eq.s32.totalorder %s18, 1
      %p99 = scmp.ne.s32.totalorder %s94, %s96
      %p100 = scmp.eq.s32.totalorder %s18, 0
      %p101 = por %p99, %p100
      %p102 = scmp.ne.s32.totalorder %s94, %s96
      %p103 = scmp.eq.s32.totalorder %s23, 1
      %p104 = por %p102, %p103
      %p105 = scmp.ne.s32.totalorder %s96, %s97
      %p106 = scmp.eq.s32.totalorder %s23, 0
      %p107 = por %p105, %p106
      %p108 = scmp.ne.s32.totalorder %s96, %s97
      %p109 = scmp.eq.s32.totalorder %s24, 1
      %p110 = por %p108, %p109
      %p112 = scmp.ne.s32.totalorder %s97, %s111
      %p113 = scmp.eq.s32.totalorder %s24, 0
      %p114 = por %p112, %p113
      %s116 = sadd.s32 %s115, 1
      %p119 = scmp.eq.s32.totalorder %s18, 1
      %p120 = scmp.ne.s32.totalorder %s115, %s117
      %p121 = scmp.eq.s32.totalorder %s18, 0
      %p122 = por %p120, %p121
      %p123 = scmp.ne.s32.totalorder %s115, %s117
      %p124 = scmp.eq.s32.totalorder %s23, 1
      %p125 = por %p123, %p124
      %p126 = scmp.ne.s32.totalorder %s117, %s118
      %p127 = scmp.eq.s32.totalorder %s23, 0
      %p128 = por %p126, %p127
      %p129 = scmp.ne.s32.totalorder %s117, %s118
      %p130 = scmp.eq.s32.totalorder %s24, 1
      %p131 = por %p129, %p130
      %p133 = scmp.ne.s32.totalorder %s118, %s132
      %p134 = scmp.eq.s32.totalorder %s24, 0
      %p135 = por %p133, %p134
      %s137 = sadd.s32 %s136, 1
      %p140 = scmp.eq.s32.totalorder %s18, 1
      %p141 = scmp.ne.s32.totalorder %s136, %s138
      %p142 = scmp.eq.s32.totalorder %s18, 0
      %p143 = por %p141, %p142
      %p144 = scmp.ne.s32.totalorder %s136, %s138
      %p145 = scmp.eq.s32.totalorder %s23, 1
      %p146 = por %p144, %p145
      %p147 = scmp.ne.s32.totalorder %s138, %s139
      %p148 = scmp.eq.s32.totalorder %s23, 0
      %p149 = por %p147, %p148
      %p150 = scmp.ne.s32.totalorder %s138, %s139
      %p151 = scmp.eq.s32.totalorder %s24, 1
      %p152 = por %p150, %p151
      %p154 = scmp.ne.s32.totalorder %s139, %s153
      %p155 = scmp.eq.s32.totalorder %s24, 0
      %p156 = por %p154, %p155
      %s158 = sadd.s32 %s157, 1
      %p161 = scmp.eq.s32.totalorder %s18, 1
      %p162 = scmp.ne.s32.totalorder %s157, %s159
      %p163 = scmp.eq.s32.totalorder %s18, 0
      %p164 = por %p162, %p163
      %p165 = scmp.ne.s32.totalorder %s157, %s159
      %p166 = scmp.eq.s32.totalorder %s23, 1
      %p167 = por %p165, %p166
      %p168 = scmp.ne.s32.totalorder %s159, %s160
      %p169 = scmp.eq.s32.totalorder %s23, 0
      %p170 = por %p168, %p169
      %p171 = scmp.ne.s32.totalorder %s159, %s160
      %p172 = scmp.eq.s32.totalorder %s24, 1
      %p173 = por %p171, %p172
      %p175 = scmp.ne.s32.totalorder %s160, %s174
      %p176 = scmp.eq.s32.totalorder %s24, 0
      %p177 = por %p175, %p176
      %s178 = ssub.s32 %s18, %s25
      %p179 = scmp.eq.s32.totalorder %s178, 0
      %s181 = sadd.s32 %s180, 1
      %s182 = scalar_select %p179, %s180, %s181
      %p185 = pneg %p179
      %p186 = scmp.eq.s32.totalorder %s18, 1
      %p187 = por %p185, %p186
      %p188 = scmp.ne.s32.totalorder %s180, %s183
      %p189 = scmp.eq.s32.totalorder %s18, 0
      %p190 = por %p188, %p189
      %p191 = scmp.ne.s32.totalorder %s180, %s183
      %p192 = scmp.eq.s32.totalorder %s23, 1
      %p193 = por %p191, %p192
      %p194 = scmp.ne.s32.totalorder %s183, %s184
      %p195 = scmp.eq.s32.totalorder %s23, 0
      %p196 = por %p194, %p195
      %p197 = scmp.ne.s32.totalorder %s183, %s184
      %p198 = scmp.eq.s32.totalorder %s24, 1
      %p199 = por %p197, %p198
      %p201 = scmp.ne.s32.totalorder %s184, %s200
      %p202 = scmp.eq.s32.totalorder %s24, 0
      %p203 = por %p201, %p202
      %p204 = scmp.le.s32.totalorder 1, %s18
      %p205 = scmp.lt.s32.totalorder %s18, 3
      %p206 = pnand %p204, %p205
      %p207 = pneg %p206
      // Predicated region
      $region9: #{tpu_custom_call.1} parent=5 // pred_check
        _
      $region10: #{tpu_custom_call.1} parent=5 // pred_check_branch
        %209 = sbr.rel (%p206) target = $region12
      $region11: #{tpu_custom_call.1} parent=5 // pred_region
        %s210 = ssub.s32 %s18, 1
        // Predicated region
        $region13: #{tpu_custom_call.1} parent=11 // pred_check
          %p211 = pneg %p65
        $region14: #{tpu_custom_call.1} parent=11 // pred_check_branch
          %213 = sbr.rel (%p211) target = $region16
        $region15: #{tpu_custom_call.1} parent=11 // pred_region
          %s215 = ssub.s32 4096, 4096
          %216 = vsyncadd [#allocation5], %s215
          %s217 = sshll.u32 [#allocation4], 4
          %s218 = int_to_ptr.vmem [resolvable:$true] %s217
          %223 = dma.hbm_to_vmem [thread:$0]  %s1, 4096, %s218, [#allocation5], 128, 128, 8
        $region16: #{tpu_custom_call.1} parent=11 // pred_fallthru
          _
        // Predicated region
        $region17: #{tpu_custom_call.1} parent=11 // pred_check
          %p224 = pneg %p86
        $region18: #{tpu_custom_call.1} parent=11 // pred_check_branch
          %226 = sbr.rel (%p224) target = $region20
        $region19: #{tpu_custom_call.1} parent=11 // pred_region
          _
        $region20: #{tpu_custom_call.1} parent=11 // pred_fallthru
          _
        // Predicated region
        $region21: #{tpu_custom_call.1} parent=11 // pred_check
          %p227 = pneg %p107
        $region22: #{tpu_custom_call.1} parent=11 // pred_check_branch
          %229 = sbr.rel (%p227) target = $region24
        $region23: #{tpu_custom_call.1} parent=11 // pred_region
          %s231 = ssub.s32 2048, 2048
          %232 = vsyncadd [#allocation5], %s231
          %s233 = sshll.u32 [#allocation6], 4
          %s234 = int_to_ptr.vmem [resolvable:$true] %s233
          %239 = dma.hbm_to_vmem [thread:$0]  %s3, 2048, %s234, [#allocation5], 128, 128, 8
        $region24: #{tpu_custom_call.1} parent=11 // pred_fallthru
          _
        // Predicated region
        $region25: #{tpu_custom_call.1} parent=11 // pred_check
          %p240 = pneg %p128
        $region26: #{tpu_custom_call.1} parent=11 // pred_check_branch
          %242 = sbr.rel (%p240) target = $region28
        $region27: #{tpu_custom_call.1} parent=11 // pred_region
          _
        $region28: #{tpu_custom_call.1} parent=11 // pred_fallthru
          _
        // Predicated region
        $region29: #{tpu_custom_call.1} parent=11 // pred_check
          %p243 = pneg %p149
        $region30: #{tpu_custom_call.1} parent=11 // pred_check_branch
          %245 = sbr.rel (%p243) target = $region32
        $region31: #{tpu_custom_call.1} parent=11 // pred_region
          %s247 = ssub.s32 2048, 2048
          %248 = vsyncadd [#allocation8], %s247
          %s249 = sshll.u32 [#allocation7], 4
          %s250 = int_to_ptr.vmem [resolvable:$true] %s249
          %255 = dma.hbm_to_vmem [thread:$0]  %s5, 2048, %s250, [#allocation8], 128, 128, 8
        $region32: #{tpu_custom_call.1} parent=11 // pred_fallthru
          _
        // Predicated region
        $region33: #{tpu_custom_call.1} parent=11 // pred_check
          %p256 = pneg %p170
        $region34: #{tpu_custom_call.1} parent=11 // pred_check_branch
          %258 = sbr.rel (%p256) target = $region36
        $region35: #{tpu_custom_call.1} parent=11 // pred_region
          _
        $region36: #{tpu_custom_call.1} parent=11 // pred_fallthru
          _
      $region12: #{tpu_custom_call.1} parent=5 // pred_fallthru
        _
      %p259 = scmp.lt.s32.totalorder %s18, 2
      // Predicated region
      $region37: #{tpu_custom_call.1} parent=5 // pred_check
        %p260 = pneg %p259
      $region38: #{tpu_custom_call.1} parent=5 // pred_check_branch
        %262 = sbr.rel (%p260) target = $region40
      $region39: #{tpu_custom_call.1} parent=5 // pred_region
        // Predicated region
        $region41: #{tpu_custom_call.1} parent=39 // pred_check
          %p263 = pneg %p38
        $region42: #{tpu_custom_call.1} parent=39 // pred_check_branch
          %265 = sbr.rel (%p263) target = $region44
        $region43: #{tpu_custom_call.1} parent=39 // pred_region
          %s266 = sand.u32 %s28, 1
          %s267 = scalar_lea.sflag [#allocation3], %s266
          %s268 = sand.u32 %s28, 1
          %s269 = smul.addr %s268, 256
          %s270 = scalar_lea.vmem [#allocation2], %s269
          %s271 = smul.u32 16, %s18
          %s273 = ssub.s32 4096, 4096
          %274 = vsyncadd %s267, %s273
          %s275 = smul.addr %s271, 2
          %s276 = smul.addr %s275, 128
          %s277 = scalar_lea.hbm %s0, %s276
          %s278 = sshll.u32 %s270, 4
          %s279 = int_to_ptr.vmem [resolvable:$true] %s278
          %284 = dma.hbm_to_vmem [thread:$0]  %s277, 4096, %s279, %s267, 256, 256, 16
        $region44: #{tpu_custom_call.1} parent=39 // pred_fallthru
          _
      $region40: #{tpu_custom_call.1} parent=5 // pred_fallthru
        _
      %p285 = scmp.le.s32.totalorder 1, %s18
      %p286 = scmp.lt.s32.totalorder %s18, 3
      %p287 = pnand %p285, %p286
      %p288 = pneg %p287
      // Predicated region
      $region45: #{tpu_custom_call.1} parent=5 // pred_check
        _
      $region46: #{tpu_custom_call.1} parent=5 // pred_check_branch
        %290 = sbr.rel (%p287) target = $region48
      $region47: #{tpu_custom_call.1} parent=5 // pred_region
        %s291 = ssub.s32 %s18, 1
        %s292 = sand.u32 %s31, 1
        %s293 = scalar_lea.sflag [#allocation3], %s292
        %s294 = sand.u32 %s31, 1
        %s295 = smul.addr %s294, 256
        %s296 = scalar_lea.vmem [#allocation2], %s295
        // Predicated region
        $region49: #{tpu_custom_call.1} parent=47 // pred_check
          %p297 = pneg %p44
        $region50: #{tpu_custom_call.1} parent=47 // pred_check_branch
          %299 = sbr.rel (%p297) target = $region52
        $region51: #{tpu_custom_call.1} parent=47 // pred_region
          %300 = dma.done %s293, 4096
        $region52: #{tpu_custom_call.1} parent=47 // pred_fallthru
          _
        // Predicated region
        $region53: #{tpu_custom_call.1} parent=47 // pred_check
          %p301 = pneg %p65
        $region54: #{tpu_custom_call.1} parent=47 // pred_check_branch
          %303 = sbr.rel (%p301) target = $region56
        $region55: #{tpu_custom_call.1} parent=47 // pred_region
          %304 = dma.done [#allocation5], 4096
        $region56: #{tpu_custom_call.1} parent=47 // pred_fallthru
          _
        // Predicated region
        $region57: #{tpu_custom_call.1} parent=47 // pred_check
          %p305 = pneg %p107
        $region58: #{tpu_custom_call.1} parent=47 // pred_check_branch
          %307 = sbr.rel (%p305) target = $region60
        $region59: #{tpu_custom_call.1} parent=47 // pred_region
          %308 = dma.done [#allocation5], 2048
        $region60: #{tpu_custom_call.1} parent=47 // pred_fallthru
          _
        // Predicated region
        $region61: #{tpu_custom_call.1} parent=47 // pred_check
          %p309 = pneg %p149
        $region62: #{tpu_custom_call.1} parent=47 // pred_check_branch
          %311 = sbr.rel (%p309) target = $region64
        $region63: #{tpu_custom_call.1} parent=47 // pred_region
          %312 = dma.done [#allocation8], 2048
        $region64: #{tpu_custom_call.1} parent=47 // pred_fallthru
          _
        %s313 = sand.u32 %s31, 1
        %s314 = scalar_lea.sflag [#allocation3], %s313
        %s315 = sand.u32 %s31, 1
        %s316 = smul.addr %s315, 256
        %s317 = scalar_lea.vmem [#allocation2], %s316
        %p318 = pneg %p44
        %p319 = pneg %p41
        %p320 = pneg %p65
        %p321 = pneg %p62
        %p322 = pneg %p86
        %p323 = pneg %p83
        %p324 = pneg %p107
        %p325 = pneg %p104
        %p326 = pneg %p128
        %p327 = pneg %p125
        %p328 = pneg %p149
        %p329 = pneg %p146
        %p330 = pneg %p170
        %p331 = pneg %p167
        %p332 = pneg %p196
        %p333 = pneg %p193
        %s334 = smul.u32 16, %s23
        %p335 = scmp.lt.s32.totalorder %s334, 31
        %s336 = scalar_select %p335, %s334, 31
        %s337 = smul.addr %s336, 8
        %s338 = scalar_lea.vmem %s7, %s337
        %s339 = smul.u32 16, %s23
        %s340 = smul.u32 16, %s23
        %p341 = scmp.lt.s32.totalorder %s340, 31
        %s342 = scalar_select %p341, %s340, 31
        %s343 = smul.addr %s342, 8
        %s344 = scalar_lea.vmem %s7, %s343
        %s345 = smul.u32 16, %s23
        %v346 = vld [vmem:[%s296] sm:$0xff]
        %v347 = vld [vmem:[%s296 + $0x8] sm:$0xff]
        %v348 = vld [vmem:[%s296 + $0x10] sm:$0xff]
        %v349 = vld [vmem:[%s296 + $0x18] sm:$0xff]
        %v350 = vld [vmem:[%s296 + $0x20] sm:$0xff]
        %v351 = vld [vmem:[%s296 + $0x28] sm:$0xff]
        %v352 = vld [vmem:[%s296 + $0x30] sm:$0xff]
        %v353 = vld [vmem:[%s296 + $0x38] sm:$0xff]
        %v354 = vld [vmem:[%s296 + $0x40] sm:$0xff]
        %v355 = vld [vmem:[%s296 + $0x48] sm:$0xff]
        %v356 = vld [vmem:[%s296 + $0x50] sm:$0xff]
        %v357 = vld [vmem:[%s296 + $0x58] sm:$0xff]
        %v358 = vld [vmem:[%s296 + $0x60] sm:$0xff]
        %v359 = vld [vmem:[%s296 + $0x68] sm:$0xff]
        %v360 = vld [vmem:[%s296 + $0x70] sm:$0xff]
        %v361 = vld [vmem:[%s296 + $0x78] sm:$0xff]
        %v362 = vld [vmem:[%s296 + $0x80] sm:$0xff]
        %v363 = vld [vmem:[%s296 + $0x88] sm:$0xff]
        %v364 = vld [vmem:[%s296 + $0x90] sm:$0xff]
        %v365 = vld [vmem:[%s296 + $0x98] sm:$0xff]
        %v366 = vld [vmem:[%s296 + $0xa0] sm:$0xff]
        %v367 = vld [vmem:[%s296 + $0xa8] sm:$0xff]
        %v368 = vld [vmem:[%s296 + $0xb0] sm:$0xff]
        %v369 = vld [vmem:[%s296 + $0xb8] sm:$0xff]
        %v370 = vld [vmem:[%s296 + $0xc0] sm:$0xff]
        %v371 = vld [vmem:[%s296 + $0xc8] sm:$0xff]
        %v372 = vld [vmem:[%s296 + $0xd0] sm:$0xff]
        %v373 = vld [vmem:[%s296 + $0xd8] sm:$0xff]
        %v374 = vld [vmem:[%s296 + $0xe0] sm:$0xff]
        %v375 = vld [vmem:[%s296 + $0xe8] sm:$0xff]
        %v376 = vld [vmem:[%s296 + $0xf0] sm:$0xff]
        %v377 = vld [vmem:[%s296 + $0xf8] sm:$0xff]
        %v378 = vld [vmem:[#allocation4] sm:$0xff]
        %v379 = vld [vmem:[#allocation4 + $0x8] sm:$0xff]
        %v380 = vld [vmem:[#allocation4 + $0x10] sm:$0xff]
        %v381 = vld [vmem:[#allocation4 + $0x18] sm:$0xff]
        %v382 = vld [vmem:[#allocation4 + $0x20] sm:$0xff]
        %v383 = vld [vmem:[#allocation4 + $0x28] sm:$0xff]
        %v384 = vld [vmem:[#allocation4 + $0x30] sm:$0xff]
        %v385 = vld [vmem:[#allocation4 + $0x38] sm:$0xff]
        %v386 = vld [vmem:[#allocation4 + $0x40] sm:$0xff]
        %v387 = vld [vmem:[#allocation4 + $0x48] sm:$0xff]
        %v388 = vld [vmem:[#allocation4 + $0x50] sm:$0xff]
        %v389 = vld [vmem:[#allocation4 + $0x58] sm:$0xff]
        %v390 = vld [vmem:[#allocation4 + $0x60] sm:$0xff]
        %v391 = vld [vmem:[#allocation4 + $0x68] sm:$0xff]
        %v392 = vld [vmem:[#allocation4 + $0x70] sm:$0xff]
        %v393 = vld [vmem:[#allocation4 + $0x78] sm:$0xff]
        %v394 = vld [vmem:[#allocation4 + $0x80] sm:$0xff]
        %v395 = vld [vmem:[#allocation4 + $0x88] sm:$0xff]
        %v396 = vld [vmem:[#allocation4 + $0x90] sm:$0xff]
        %v397 = vld [vmem:[#allocation4 + $0x98] sm:$0xff]
        %v398 = vld [vmem:[#allocation4 + $0xa0] sm:$0xff]
        %v399 = vld [vmem:[#allocation4 + $0xa8] sm:$0xff]
        %v400 = vld [vmem:[#allocation4 + $0xb0] sm:$0xff]
        %v401 = vld [vmem:[#allocation4 + $0xb8] sm:$0xff]
        %v402 = vld [vmem:[#allocation4 + $0xc0] sm:$0xff]
        %v403 = vld [vmem:[#allocation4 + $0xc8] sm:$0xff]
        %v404 = vld [vmem:[#allocation4 + $0xd0] sm:$0xff]
        %v405 = vld [vmem:[#allocation4 + $0xd8] sm:$0xff]
        %v406 = vld [vmem:[#allocation4 + $0xe0] sm:$0xff]
        %v407 = vld [vmem:[#allocation4 + $0xe8] sm:$0xff]
        %v408 = vld [vmem:[#allocation4 + $0xf0] sm:$0xff]
        %v409 = vld [vmem:[#allocation4 + $0xf8] sm:$0xff]
        %v410 = vld [vmem:[%s2] sm:$0x1]
        %v412 = vlaneseq
        %v413 = vshrl.u32 %v412, 7
        %v414 = vsub.s32 0, %v413
        %v415 = vrot.slane %v410, %v414
        %417 = vmatprep.subr.mxu0 0.0
        %418 = vmatpush1.msra.mxu0 %v393
        %419 = vmatprep.subr.mxu0 0.0
        %420 = vmatpush1.msra.mxu0 %v392
        %421 = vmatprep.subr.mxu0 0.0
        %422 = vmatpush1.msra.mxu0 %v391
        %423 = vmatprep.subr.mxu0 0.0
        %424 = vmatpush1.msra.mxu0 %v390
        %425 = vmatprep.subr.mxu0 0.0
        %426 = vmatpush1.msra.mxu0 %v389
        %427 = vmatprep.subr.mxu0 0.0
        %428 = vmatpush1.msra.mxu0 %v388
        %429 = vmatprep.subr.mxu0 0.0
        %430 = vmatpush1.msra.mxu0 %v387
        %431 = vmatprep.subr.mxu0 0.0
        %432 = vmatpush1.msra.mxu0 %v386
        %433 = vmatprep.subr.mxu0 0.0
        %434 = vmatpush1.msra.mxu0 %v385
        %435 = vmatprep.subr.mxu0 0.0
        %436 = vmatpush1.msra.mxu0 %v384
        %437 = vmatprep.subr.mxu0 0.0
        %438 = vmatpush1.msra.mxu0 %v383
        %439 = vmatprep.subr.mxu0 0.0
        %440 = vmatpush1.msra.mxu0 %v382
        %441 = vmatprep.subr.mxu0 0.0
        %442 = vmatpush1.msra.mxu0 %v381
        %443 = vmatprep.subr.mxu0 0.0
        %444 = vmatpush1.msra.mxu0 %v380
        %445 = vmatprep.subr.mxu0 0.0
        %446 = vmatpush1.msra.mxu0 %v379
        %447 = vmatprep.subr.mxu0 0.0
        %448 = vmatpush1.msra.mxu0 %v378
        %449 = vmatprep.subr.mxu0 0.0
        %450 = vmatpush2.msra.mxu0 %v409
        %451 = vmatprep.subr.mxu0 0.0
        %452 = vmatpush2.msra.mxu0 %v408
        %453 = vmatprep.subr.mxu0 0.0
        %454 = vmatpush2.msra.mxu0 %v407
        %455 = vmatprep.subr.mxu0 0.0
        %456 = vmatpush2.msra.mxu0 %v406
        %457 = vmatprep.subr.mxu0 0.0
        %458 = vmatpush2.msra.mxu0 %v405
        %459 = vmatprep.subr.mxu0 0.0
        %460 = vmatpush2.msra.mxu0 %v404
        %461 = vmatprep.subr.mxu0 0.0
        %462 = vmatpush2.msra.mxu0 %v403
        %463 = vmatprep.subr.mxu0 0.0
        %464 = vmatpush2.msra.mxu0 %v402
        %465 = vmatprep.subr.mxu0 0.0
        %466 = vmatpush2.msra.mxu0 %v401
        %467 = vmatprep.subr.mxu0 0.0
        %468 = vmatpush2.msra.mxu0 %v400
        %469 = vmatprep.subr.mxu0 0.0
        %470 = vmatpush2.msra.mxu0 %v399
        %471 = vmatprep.subr.mxu0 0.0
        %472 = vmatpush2.msra.mxu0 %v398
        %473 = vmatprep.subr.mxu0 0.0
        %474 = vmatpush2.msra.mxu0 %v397
        %475 = vmatprep.subr.mxu0 0.0
        %476 = vmatpush2.msra.mxu0 %v396
        %477 = vmatprep.subr.mxu0 0.0
        %478 = vmatpush2.msra.mxu0 %v395
        %479 = vmatprep.subr.mxu0 0.0
        %480 = vmatpush2.msra.mxu0 %v394
        %481 = vmatprep.mubr.f32.mxu0 %v347
        %482 = vmatmul.mubr.f32.gmra.mxu0 %v346
        %v483 = vpop.f32.mrf.mxu0
        %v484 = vadd.f32 %v415, %v483
        %v485 = vpop.f32.mrf.mxu0
        %486 = vmatprep.mubr.f32.mxu0 %v349
        %487 = vmatmul.mubr.f32.gmra.mxu0 %v348
        %v488 = vpop.f32.mrf.mxu0
        %v489 = vadd.f32 %v415, %v488
        %v490 = vpop.f32.mrf.mxu0
        %491 = vmatprep.mubr.f32.mxu0 %v351
        %492 = vmatmul.mubr.f32.gmra.mxu0 %v350
        %v493 = vpop.f32.mrf.mxu0
        %v494 = vadd.f32 %v415, %v493
        %v495 = vpop.f32.mrf.mxu0
        %496 = vmatprep.mubr.f32.mxu0 %v353
        %497 = vmatmul.mubr.f32.gmra.mxu0 %v352
        %v498 = vpop.f32.mrf.mxu0
        %v499 = vadd.f32 %v415, %v498
        %v500 = vpop.f32.mrf.mxu0
        %501 = vmatprep.mubr.f32.mxu0 %v355
        %502 = vmatmul.mubr.f32.gmra.mxu0 %v354
        %v503 = vpop.f32.mrf.mxu0
        %v504 = vadd.f32 %v415, %v503
        %v505 = vpop.f32.mrf.mxu0
        %506 = vmatprep.mubr.f32.mxu0 %v357
        %507 = vmatmul.mubr.f32.gmra.mxu0 %v356
        %v508 = vpop.f32.mrf.mxu0
        %v509 = vadd.f32 %v415, %v508
        %v510 = vpop.f32.mrf.mxu0
        %511 = vmatprep.mubr.f32.mxu0 %v359
        %512 = vmatmul.mubr.f32.gmra.mxu0 %v358
        %v513 = vpop.f32.mrf.mxu0
        %v514 = vadd.f32 %v415, %v513
        %v515 = vpop.f32.mrf.mxu0
        %516 = vmatprep.mubr.f32.mxu0 %v361
        %517 = vmatmul.mubr.f32.gmra.mxu0 %v360
        %v518 = vpop.f32.mrf.mxu0
        %v519 = vadd.f32 %v415, %v518
        %v520 = vpop.f32.mrf.mxu0
        %521 = vmatprep.mubr.f32.mxu0 %v363
        %522 = vmatmul.mubr.f32.gmra.mxu0 %v362
        %v523 = vpop.f32.mrf.mxu0
        %v524 = vadd.f32 %v415, %v523
        %v525 = vpop.f32.mrf.mxu0
        %526 = vmatprep.mubr.f32.mxu0 %v365
        %527 = vmatmul.mubr.f32.gmra.mxu0 %v364
        %v528 = vpop.f32.mrf.mxu0
        %v529 = vadd.f32 %v415, %v528
        %v530 = vpop.f32.mrf.mxu0
        %531 = vmatprep.mubr.f32.mxu0 %v367
        %532 = vmatmul.mubr.f32.gmra.mxu0 %v366
        %v533 = vpop.f32.mrf.mxu0
        %v534 = vadd.f32 %v415, %v533
        %v535 = vpop.f32.mrf.mxu0
        %536 = vmatprep.mubr.f32.mxu0 %v369
        %537 = vmatmul.mubr.f32.gmra.mxu0 %v368
        %v538 = vpop.f32.mrf.mxu0
        %v539 = vadd.f32 %v415, %v538
        %v540 = vpop.f32.mrf.mxu0
        %541 = vmatprep.mubr.f32.mxu0 %v371
        %542 = vmatmul.mubr.f32.gmra.mxu0 %v370
        %v543 = vpop.f32.mrf.mxu0
        %v544 = vadd.f32 %v415, %v543
        %v545 = vpop.f32.mrf.mxu0
        %546 = vmatprep.mubr.f32.mxu0 %v373
        %547 = vmatmul.mubr.f32.gmra.mxu0 %v372
        %v548 = vpop.f32.mrf.mxu0
        %v549 = vadd.f32 %v415, %v548
        %v550 = vpop.f32.mrf.mxu0
        %551 = vmatprep.mubr.f32.mxu0 %v375
        %552 = vmatmul.mubr.f32.gmra.mxu0 %v374
        %v553 = vpop.f32.mrf.mxu0
        %v554 = vadd.f32 %v415, %v553
        %v555 = vpop.f32.mrf.mxu0
        %556 = vmatprep.mubr.f32.mxu0 %v377
        %557 = vmatmul.mubr.f32.gmra.mxu0 %v376
        %v558 = vpop.f32.mrf.mxu0
        %v559 = vadd.f32 %v415, %v558
        %v560 = vpop.f32.mrf.mxu0
        %561 = vdwg.mxu0
        %v562 = vmax.f32 %v484, 0.0
        %v563 = vmax.f32 %v489, 0.0
        %v564 = vmax.f32 %v494, 0.0
        %v565 = vmax.f32 %v499, 0.0
        %v566 = vmax.f32 %v504, 0.0
        %v567 = vmax.f32 %v509, 0.0
        %v568 = vmax.f32 %v514, 0.0
        %v569 = vmax.f32 %v519, 0.0
        %v570 = vmax.f32 %v524, 0.0
        %v571 = vmax.f32 %v529, 0.0
        %v572 = vmax.f32 %v534, 0.0
        %v573 = vmax.f32 %v539, 0.0
        %v574 = vmax.f32 %v544, 0.0
        %v575 = vmax.f32 %v549, 0.0
        %v576 = vmax.f32 %v554, 0.0
        %v577 = vmax.f32 %v559, 0.0
        %v578 = vld [vmem:[#allocation6] sm:$0xff]
        %v579 = vld [vmem:[#allocation6 + $0x8] sm:$0xff]
        %v580 = vld [vmem:[#allocation6 + $0x10] sm:$0xff]
        %v581 = vld [vmem:[#allocation6 + $0x18] sm:$0xff]
        %v582 = vld [vmem:[#allocation6 + $0x20] sm:$0xff]
        %v583 = vld [vmem:[#allocation6 + $0x28] sm:$0xff]
        %v584 = vld [vmem:[#allocation6 + $0x30] sm:$0xff]
        %v585 = vld [vmem:[#allocation6 + $0x38] sm:$0xff]
        %v586 = vld [vmem:[#allocation6 + $0x40] sm:$0xff]
        %v587 = vld [vmem:[#allocation6 + $0x48] sm:$0xff]
        %v588 = vld [vmem:[#allocation6 + $0x50] sm:$0xff]
        %v589 = vld [vmem:[#allocation6 + $0x58] sm:$0xff]
        %v590 = vld [vmem:[#allocation6 + $0x60] sm:$0xff]
        %v591 = vld [vmem:[#allocation6 + $0x68] sm:$0xff]
        %v592 = vld [vmem:[#allocation6 + $0x70] sm:$0xff]
        %v593 = vld [vmem:[#allocation6 + $0x78] sm:$0xff]
        %v594 = vld [vmem:[%s4] sm:$0x1]
        %v596 = vlaneseq
        %v597 = vshrl.u32 %v596, 7
        %v598 = vsub.s32 0, %v597
        %v599 = vrot.slane %v594, %v598
        %601 = vmatprep.subr.mxu0 0.0
        %602 = vmatpush1.msra.mxu0 %v593
        %603 = vmatprep.subr.mxu0 0.0
        %604 = vmatpush1.msra.mxu0 %v592
        %605 = vmatprep.subr.mxu0 0.0
        %606 = vmatpush1.msra.mxu0 %v591
        %607 = vmatprep.subr.mxu0 0.0
        %608 = vmatpush1.msra.mxu0 %v590
        %609 = vmatprep.subr.mxu0 0.0
        %610 = vmatpush1.msra.mxu0 %v589
        %611 = vmatprep.subr.mxu0 0.0
        %612 = vmatpush1.msra.mxu0 %v588
        %613 = vmatprep.subr.mxu0 0.0
        %614 = vmatpush1.msra.mxu0 %v587
        %615 = vmatprep.subr.mxu0 0.0
        %616 = vmatpush1.msra.mxu0 %v586
        %617 = vmatprep.subr.mxu0 0.0
        %618 = vmatpush1.msra.mxu0 %v585
        %619 = vmatprep.subr.mxu0 0.0
        %620 = vmatpush1.msra.mxu0 %v584
        %621 = vmatprep.subr.mxu0 0.0
        %622 = vmatpush1.msra.mxu0 %v583
        %623 = vmatprep.subr.mxu0 0.0
        %624 = vmatpush1.msra.mxu0 %v582
        %625 = vmatprep.subr.mxu0 0.0
        %626 = vmatpush1.msra.mxu0 %v581
        %627 = vmatprep.subr.mxu0 0.0
        %628 = vmatpush1.msra.mxu0 %v580
        %629 = vmatprep.subr.mxu0 0.0
        %630 = vmatpush1.msra.mxu0 %v579
        %631 = vmatprep.subr.mxu0 0.0
        %632 = vmatpush1.msra.mxu0 %v578
        %633 = vmatprep.subr.mxu0 0.0
        %634 = vmatpush2.msra.mxu0 0.0
        %635 = vmatprep.subr.mxu0 0.0
        %636 = vmatpush2.msra.mxu0 0.0
        %637 = vmatprep.subr.mxu0 0.0
        %638 = vmatpush2.msra.mxu0 0.0
        %639 = vmatprep.subr.mxu0 0.0
        %640 = vmatpush2.msra.mxu0 0.0
        %641 = vmatprep.subr.mxu0 0.0
        %642 = vmatpush2.msra.mxu0 0.0
        %643 = vmatprep.subr.mxu0 0.0
        %644 = vmatpush2.msra.mxu0 0.0
        %645 = vmatprep.subr.mxu0 0.0
        %646 = vmatpush2.msra.mxu0 0.0
        %647 = vmatprep.subr.mxu0 0.0
        %648 = vmatpush2.msra.mxu0 0.0
        %649 = vmatprep.subr.mxu0 0.0
        %650 = vmatpush2.msra.mxu0 0.0
        %651 = vmatprep.subr.mxu0 0.0
        %652 = vmatpush2.msra.mxu0 0.0
        %653 = vmatprep.subr.mxu0 0.0
        %654 = vmatpush2.msra.mxu0 0.0
        %655 = vmatprep.subr.mxu0 0.0
        %656 = vmatpush2.msra.mxu0 0.0
        %657 = vmatprep.subr.mxu0 0.0
        %658 = vmatpush2.msra.mxu0 0.0
        %659 = vmatprep.subr.mxu0 0.0
        %660 = vmatpush2.msra.mxu0 0.0
        %661 = vmatprep.subr.mxu0 0.0
        %662 = vmatpush2.msra.mxu0 0.0
        %663 = vmatprep.subr.mxu0 0.0
        %664 = vmatpush2.msra.mxu0 0.0
        %665 = vmatprep.mubr.f32.mxu0 0.0
        %666 = vmatmul.mubr.f32.gmra.mxu0 %v562
        %v667 = vpop.f32.mrf.mxu0
        %v668 = vadd.f32 %v599, %v667
        %v669 = vpop.f32.mrf.mxu0
        %670 = vmatprep.mubr.f32.mxu0 0.0
        %671 = vmatmul.mubr.f32.gmra.mxu0 %v563
        %v672 = vpop.f32.mrf.mxu0
        %v673 = vadd.f32 %v599, %v672
        %v674 = vpop.f32.mrf.mxu0
        %675 = vmatprep.mubr.f32.mxu0 0.0
        %676 = vmatmul.mubr.f32.gmra.mxu0 %v564
        %v677 = vpop.f32.mrf.mxu0
        %v678 = vadd.f32 %v599, %v677
        %v679 = vpop.f32.mrf.mxu0
        %680 = vmatprep.mubr.f32.mxu0 0.0
        %681 = vmatmul.mubr.f32.gmra.mxu0 %v565
        %v682 = vpop.f32.mrf.mxu0
        %v683 = vadd.f32 %v599, %v682
        %v684 = vpop.f32.mrf.mxu0
        %685 = vmatprep.mubr.f32.mxu0 0.0
        %686 = vmatmul.mubr.f32.gmra.mxu0 %v566
        %v687 = vpop.f32.mrf.mxu0
        %v688 = vadd.f32 %v599, %v687
        %v689 = vpop.f32.mrf.mxu0
        %690 = vmatprep.mubr.f32.mxu0 0.0
        %691 = vmatmul.mubr.f32.gmra.mxu0 %v567
        %v692 = vpop.f32.mrf.mxu0
        %v693 = vadd.f32 %v599, %v692
        %v694 = vpop.f32.mrf.mxu0
        %695 = vmatprep.mubr.f32.mxu0 0.0
        %696 = vmatmul.mubr.f32.gmra.mxu0 %v568
        %v697 = vpop.f32.mrf.mxu0
        %v698 = vadd.f32 %v599, %v697
        %v699 = vpop.f32.mrf.mxu0
        %700 = vmatprep.mubr.f32.mxu0 0.0
        %701 = vmatmul.mubr.f32.gmra.mxu0 %v569
        %v702 = vpop.f32.mrf.mxu0
        %v703 = vadd.f32 %v599, %v702
        %v704 = vpop.f32.mrf.mxu0
        %705 = vmatprep.mubr.f32.mxu0 0.0
        %706 = vmatmul.mubr.f32.gmra.mxu0 %v570
        %v707 = vpop.f32.mrf.mxu0
        %v708 = vadd.f32 %v599, %v707
        %v709 = vpop.f32.mrf.mxu0
        %710 = vmatprep.mubr.f32.mxu0 0.0
        %711 = vmatmul.mubr.f32.gmra.mxu0 %v571
        %v712 = vpop.f32.mrf.mxu0
        %v713 = vadd.f32 %v599, %v712
        %v714 = vpop.f32.mrf.mxu0
        %715 = vmatprep.mubr.f32.mxu0 0.0
        %716 = vmatmul.mubr.f32.gmra.mxu0 %v572
        %v717 = vpop.f32.mrf.mxu0
        %v718 = vadd.f32 %v599, %v717
        %v719 = vpop.f32.mrf.mxu0
        %720 = vmatprep.mubr.f32.mxu0 0.0
        %721 = vmatmul.mubr.f32.gmra.mxu0 %v573
        %v722 = vpop.f32.mrf.mxu0
        %v723 = vadd.f32 %v599, %v722
        %v724 = vpop.f32.mrf.mxu0
        %725 = vmatprep.mubr.f32.mxu0 0.0
        %726 = vmatmul.mubr.f32.gmra.mxu0 %v574
        %v727 = vpop.f32.mrf.mxu0
        %v728 = vadd.f32 %v599, %v727
        %v729 = vpop.f32.mrf.mxu0
        %730 = vmatprep.mubr.f32.mxu0 0.0
        %731 = vmatmul.mubr.f32.gmra.mxu0 %v575
        %v732 = vpop.f32.mrf.mxu0
        %v733 = vadd.f32 %v599, %v732
        %v734 = vpop.f32.mrf.mxu0
        %735 = vmatprep.mubr.f32.mxu0 0.0
        %736 = vmatmul.mubr.f32.gmra.mxu0 %v576
        %v737 = vpop.f32.mrf.mxu0
        %v738 = vadd.f32 %v599, %v737
        %v739 = vpop.f32.mrf.mxu0
        %740 = vmatprep.mubr.f32.mxu0 0.0
        %741 = vmatmul.mubr.f32.gmra.mxu0 %v577
        %v742 = vpop.f32.mrf.mxu0
        %v743 = vadd.f32 %v599, %v742
        %v744 = vpop.f32.mrf.mxu0
        %745 = vdwg.mxu0
        %v746 = vmax.f32 %v668, 0.0
        %v747 = vmax.f32 %v673, 0.0
        %v748 = vmax.f32 %v678, 0.0
        %v749 = vmax.f32 %v683, 0.0
        %v750 = vmax.f32 %v688, 0.0
        %v751 = vmax.f32 %v693, 0.0
        %v752 = vmax.f32 %v698, 0.0
        %v753 = vmax.f32 %v703, 0.0
        %v754 = vmax.f32 %v708, 0.0
        %v755 = vmax.f32 %v713, 0.0
        %v756 = vmax.f32 %v718, 0.0
        %v757 = vmax.f32 %v723, 0.0
        %v758 = vmax.f32 %v728, 0.0
        %v759 = vmax.f32 %v733, 0.0
        %v760 = vmax.f32 %v738, 0.0
        %v761 = vmax.f32 %v743, 0.0
        %v762 = vld [vmem:[#allocation7] sm:$0xff]
        %v763 = vld [vmem:[#allocation7 + $0x8] sm:$0xff]
        %v764 = vld [vmem:[#allocation7 + $0x10] sm:$0xff]
        %v765 = vld [vmem:[#allocation7 + $0x18] sm:$0xff]
        %v766 = vld [vmem:[#allocation7 + $0x20] sm:$0xff]
        %v767 = vld [vmem:[#allocation7 + $0x28] sm:$0xff]
        %v768 = vld [vmem:[#allocation7 + $0x30] sm:$0xff]
        %v769 = vld [vmem:[#allocation7 + $0x38] sm:$0xff]
        %v770 = vld [vmem:[#allocation7 + $0x40] sm:$0xff]
        %v771 = vld [vmem:[#allocation7 + $0x48] sm:$0xff]
        %v772 = vld [vmem:[#allocation7 + $0x50] sm:$0xff]
        %v773 = vld [vmem:[#allocation7 + $0x58] sm:$0xff]
        %v774 = vld [vmem:[#allocation7 + $0x60] sm:$0xff]
        %v775 = vld [vmem:[#allocation7 + $0x68] sm:$0xff]
        %v776 = vld [vmem:[#allocation7 + $0x70] sm:$0xff]
        %v777 = vld [vmem:[#allocation7 + $0x78] sm:$0xff]
        %v778 = vld [vmem:[%s6] sm:$0x1]
        %v780 = vlaneseq
        %v781 = vshrl.u32 %v780, 7
        %v782 = vsub.s32 0, %v781
        %v783 = vrot.slane %v778, %v782
        %785 = vmatprep.subr.mxu0 0.0
        %786 = vmatpush1.msra.mxu0 %v777
        %787 = vmatprep.subr.mxu0 0.0
        %788 = vmatpush1.msra.mxu0 %v776
        %789 = vmatprep.subr.mxu0 0.0
        %790 = vmatpush1.msra.mxu0 %v775
        %791 = vmatprep.subr.mxu0 0.0
        %792 = vmatpush1.msra.mxu0 %v774
        %793 = vmatprep.subr.mxu0 0.0
        %794 = vmatpush1.msra.mxu0 %v773
        %795 = vmatprep.subr.mxu0 0.0
        %796 = vmatpush1.msra.mxu0 %v772
        %797 = vmatprep.subr.mxu0 0.0
        %798 = vmatpush1.msra.mxu0 %v771
        %799 = vmatprep.subr.mxu0 0.0
        %800 = vmatpush1.msra.mxu0 %v770
        %801 = vmatprep.subr.mxu0 0.0
        %802 = vmatpush1.msra.mxu0 %v769
        %803 = vmatprep.subr.mxu0 0.0
        %804 = vmatpush1.msra.mxu0 %v768
        %805 = vmatprep.subr.mxu0 0.0
        %806 = vmatpush1.msra.mxu0 %v767
        %807 = vmatprep.subr.mxu0 0.0
        %808 = vmatpush1.msra.mxu0 %v766
        %809 = vmatprep.subr.mxu0 0.0
        %810 = vmatpush1.msra.mxu0 %v765
        %811 = vmatprep.subr.mxu0 0.0
        %812 = vmatpush1.msra.mxu0 %v764
        %813 = vmatprep.subr.mxu0 0.0
        %814 = vmatpush1.msra.mxu0 %v763
        %815 = vmatprep.subr.mxu0 0.0
        %816 = vmatpush1.msra.mxu0 %v762
        %817 = vmatprep.subr.mxu0 0.0
        %818 = vmatpush2.msra.mxu0 0.0
        %819 = vmatprep.subr.mxu0 0.0
        %820 = vmatpush2.msra.mxu0 0.0
        %821 = vmatprep.subr.mxu0 0.0
        %822 = vmatpush2.msra.mxu0 0.0
        %823 = vmatprep.subr.mxu0 0.0
        %824 = vmatpush2.msra.mxu0 0.0
        %825 = vmatprep.subr.mxu0 0.0
        %826 = vmatpush2.msra.mxu0 0.0
        %827 = vmatprep.subr.mxu0 0.0
        %828 = vmatpush2.msra.mxu0 0.0
        %829 = vmatprep.subr.mxu0 0.0
        %830 = vmatpush2.msra.mxu0 0.0
        %831 = vmatprep.subr.mxu0 0.0
        %832 = vmatpush2.msra.mxu0 0.0
        %833 = vmatprep.subr.mxu0 0.0
        %834 = vmatpush2.msra.mxu0 0.0
        %835 = vmatprep.subr.mxu0 0.0
        %836 = vmatpush2.msra.mxu0 0.0
        %837 = vmatprep.subr.mxu0 0.0
        %838 = vmatpush2.msra.mxu0 0.0
        %839 = vmatprep.subr.mxu0 0.0
        %840 = vmatpush2.msra.mxu0 0.0
        %841 = vmatprep.subr.mxu0 0.0
        %842 = vmatpush2.msra.mxu0 0.0
        %843 = vmatprep.subr.mxu0 0.0
        %844 = vmatpush2.msra.mxu0 0.0
        %845 = vmatprep.subr.mxu0 0.0
        %846 = vmatpush2.msra.mxu0 0.0
        %847 = vmatprep.subr.mxu0 0.0
        %848 = vmatpush2.msra.mxu0 0.0
        %849 = vmatprep.mubr.f32.mxu0 0.0
        %850 = vmatmul.mubr.f32.gmra.mxu0 %v746
        %v851 = vpop.f32.mrf.mxu0
        %v852 = vadd.f32 %v783, %v851
        %v853 = vpop.f32.mrf.mxu0
        %854 = vmatprep.mubr.f32.mxu0 0.0
        %855 = vmatmul.mubr.f32.gmra.mxu0 %v747
        %v856 = vpop.f32.mrf.mxu0
        %v857 = vadd.f32 %v783, %v856
        %v858 = vpop.f32.mrf.mxu0
        %859 = vmatprep.mubr.f32.mxu0 0.0
        %860 = vmatmul.mubr.f32.gmra.mxu0 %v748
        %v861 = vpop.f32.mrf.mxu0
        %v862 = vadd.f32 %v783, %v861
        %v863 = vpop.f32.mrf.mxu0
        %864 = vmatprep.mubr.f32.mxu0 0.0
        %865 = vmatmul.mubr.f32.gmra.mxu0 %v749
        %v866 = vpop.f32.mrf.mxu0
        %v867 = vadd.f32 %v783, %v866
        %v868 = vpop.f32.mrf.mxu0
        %869 = vmatprep.mubr.f32.mxu0 0.0
        %870 = vmatmul.mubr.f32.gmra.mxu0 %v750
        %v871 = vpop.f32.mrf.mxu0
        %v872 = vadd.f32 %v783, %v871
        %v873 = vpop.f32.mrf.mxu0
        %874 = vmatprep.mubr.f32.mxu0 0.0
        %875 = vmatmul.mubr.f32.gmra.mxu0 %v751
        %v876 = vpop.f32.mrf.mxu0
        %v877 = vadd.f32 %v783, %v876
        %v878 = vpop.f32.mrf.mxu0
        %879 = vmatprep.mubr.f32.mxu0 0.0
        %880 = vmatmul.mubr.f32.gmra.mxu0 %v752
        %v881 = vpop.f32.mrf.mxu0
        %v882 = vadd.f32 %v783, %v881
        %v883 = vpop.f32.mrf.mxu0
        %884 = vmatprep.mubr.f32.mxu0 0.0
        %885 = vmatmul.mubr.f32.gmra.mxu0 %v753
        %v886 = vpop.f32.mrf.mxu0
        %v887 = vadd.f32 %v783, %v886
        %v888 = vpop.f32.mrf.mxu0
        %889 = vmatprep.mubr.f32.mxu0 0.0
        %890 = vmatmul.mubr.f32.gmra.mxu0 %v754
        %v891 = vpop.f32.mrf.mxu0
        %v892 = vadd.f32 %v783, %v891
        %v893 = vpop.f32.mrf.mxu0
        %894 = vmatprep.mubr.f32.mxu0 0.0
        %895 = vmatmul.mubr.f32.gmra.mxu0 %v755
        %v896 = vpop.f32.mrf.mxu0
        %v897 = vadd.f32 %v783, %v896
        %v898 = vpop.f32.mrf.mxu0
        %899 = vmatprep.mubr.f32.mxu0 0.0
        %900 = vmatmul.mubr.f32.gmra.mxu0 %v756
        %v901 = vpop.f32.mrf.mxu0
        %v902 = vadd.f32 %v783, %v901
        %v903 = vpop.f32.mrf.mxu0
        %904 = vmatprep.mubr.f32.mxu0 0.0
        %905 = vmatmul.mubr.f32.gmra.mxu0 %v757
        %v906 = vpop.f32.mrf.mxu0
        %v907 = vadd.f32 %v783, %v906
        %v908 = vpop.f32.mrf.mxu0
        %909 = vmatprep.mubr.f32.mxu0 0.0
        %910 = vmatmul.mubr.f32.gmra.mxu0 %v758
        %v911 = vpop.f32.mrf.mxu0
        %v912 = vadd.f32 %v783, %v911
        %v913 = vpop.f32.mrf.mxu0
        %914 = vmatprep.mubr.f32.mxu0 0.0
        %915 = vmatmul.mubr.f32.gmra.mxu0 %v759
        %v916 = vpop.f32.mrf.mxu0
        %v917 = vadd.f32 %v783, %v916
        %v918 = vpop.f32.mrf.mxu0
        %919 = vmatprep.mubr.f32.mxu0 0.0
        %920 = vmatmul.mubr.f32.gmra.mxu0 %v760
        %v921 = vpop.f32.mrf.mxu0
        %v922 = vadd.f32 %v783, %v921
        %v923 = vpop.f32.mrf.mxu0
        %924 = vmatprep.mubr.f32.mxu0 0.0
        %925 = vmatmul.mubr.f32.gmra.mxu0 %v761
        %v926 = vpop.f32.mrf.mxu0
        %v927 = vadd.f32 %v783, %v926
        %v928 = vpop.f32.mrf.mxu0
        %929 = vdwg.mxu0
        %vm930 = vcmask 15360
        %931 = vst.msk [vmem:[%s344] sm:$0xff] %vm930, %v852
        %932 = vst.msk [vmem:[%s344 + $0x8] sm:$0xff] %vm930, %v857
        %933 = vst.msk [vmem:[%s344 + $0x10] sm:$0xff] %vm930, %v862
        %934 = vst.msk [vmem:[%s344 + $0x18] sm:$0xff] %vm930, %v867
        %935 = vst.msk [vmem:[%s344 + $0x20] sm:$0xff] %vm930, %v872
        %936 = vst.msk [vmem:[%s344 + $0x28] sm:$0xff] %vm930, %v877
        %937 = vst.msk [vmem:[%s344 + $0x30] sm:$0xff] %vm930, %v882
        %938 = vst.msk [vmem:[%s344 + $0x38] sm:$0xff] %vm930, %v887
        %939 = vst.msk [vmem:[%s344 + $0x40] sm:$0xff] %vm930, %v892
        %940 = vst.msk [vmem:[%s344 + $0x48] sm:$0xff] %vm930, %v897
        %941 = vst.msk [vmem:[%s344 + $0x50] sm:$0xff] %vm930, %v902
        %942 = vst.msk [vmem:[%s344 + $0x58] sm:$0xff] %vm930, %v907
        %943 = vst.msk [vmem:[%s344 + $0x60] sm:$0xff] %vm930, %v912
        %944 = vst.msk [vmem:[%s344 + $0x68] sm:$0xff] %vm930, %v917
        %945 = vst.msk [vmem:[%s344 + $0x70] sm:$0xff] %vm930, %v922
        %946 = vst.msk [vmem:[%s344 + $0x78] sm:$0xff] %vm930, %v927
        %s947 = smul.u32 16, %s23
        %p948 = scmp.lt.s32.totalorder %s947, 31
        %s949 = scalar_select %p948, %s947, 31
        %s950 = smul.addr %s949, 8
        %s951 = scalar_lea.vmem %s7, %s950
        // Predicated region
        $region65: #{tpu_custom_call.1} parent=47 // pred_check
          %p952 = pneg %p193
        $region66: #{tpu_custom_call.1} parent=47 // pred_check_branch
          %954 = sbr.rel (%p952) target = $region68
        $region67: #{tpu_custom_call.1} parent=47 // pred_region
          %s955 = smul.u32 16, %s23
        $region68: #{tpu_custom_call.1} parent=47 // pred_fallthru
          _
      $region48: #{tpu_custom_call.1} parent=5 // pred_fallthru
        _
      %p956 = scmp.le.s32.totalorder 2, %s18
      // Predicated region
      $region69: #{tpu_custom_call.1} parent=5 // pred_check
        %p957 = pneg %p956
      $region70: #{tpu_custom_call.1} parent=5 // pred_check_branch
        %959 = sbr.rel (%p957) target = $region72
      $region71: #{tpu_custom_call.1} parent=5 // pred_region
        %s960 = ssub.s32 %s18, 2
        // Predicated region
        $region73: #{tpu_custom_call.1} parent=71 // pred_check
          %p961 = pneg %p199
        $region74: #{tpu_custom_call.1} parent=71 // pred_check_branch
          %963 = sbr.rel (%p961) target = $region76
        $region75: #{tpu_custom_call.1} parent=71 // pred_region
          %s964 = smul.u32 16, %s24
          %p965 = scmp.lt.s32.totalorder %s964, 31
          %s966 = scalar_select %p965, %s964, 31
          %s967 = smul.addr %s966, 8
          %s968 = scalar_lea.vmem %s7, %s967
        $region76: #{tpu_custom_call.1} parent=71 // pred_fallthru
          _
      $region72: #{tpu_custom_call.1} parent=5 // pred_fallthru
        _
    $region6: #{tpu_custom_call.1} parent=1 // loop_footer
      %s22 = sadd.s32 1, %s18
    $region7: #{tpu_custom_call.1} parent=1 // loop_footer_branch
      %17 = sbr.rel target = $region3
    $region8: #{tpu_custom_call.1} parent=1 // loop_exit
      _
    %969 = vsyncpa [#allocation3], 1
    %s970 = scalar_lea.sflag [#allocation3], 1
    %971 = vsyncpa %s970, 1
    %972 = vsyncpa [#allocation5], 1
    %973 = vsyncpa [#allocation8], 1

</llo_original>
